<compile_context>
chip_gen: v5e
topology: v5e:2x2
jax: 0.10.0
libtpu: 0.0.40
codegen_flags: <defaults>
</compile_context>

<pallas_src>
import functools

import jax
import jax.numpy as jnp
from jax.experimental import pallas as pl
from jax.experimental.pallas import tpu as pltpu

_LANES = 128
_MAX_BLOCK_ROWS = 8192                 # 8192 x 128 x 4B = 4 MiB per f32 tile
_EPS = 1e-6
_VMEM_LIMIT_BYTES = 40 * 1024 * 1024   # explicit budget: 16 MiB buffers + headroom


def _mrae_kernel(out_ref, lab_ref, o_ref, acc_ref, *, rows_in_last, approx_recip):
    i = pl.program_id(0)
    last = pl.num_programs(0) - 1

    @pl.when(i == 0)
    def _init():
        acc_ref[...] = jnp.zeros_like(acc_ref)

    out = out_ref[...].astype(jnp.float32)
    lab = lab_ref[...].astype(jnp.float32)
    diff = jnp.abs(out - lab)
    denom = lab + jnp.float32(_EPS)
    if approx_recip:
        err = diff * pl.reciprocal(denom, approx=True)   # EUP slot
    else:
        err = diff / denom                               # exact, matches reference

    if rows_in_last:
        # Only the final block is ragged; gate the mask machinery so every
        # other block stays on the unmasked hot path.
        @pl.when(i != last)
        def _full_block():
            acc_ref[...] += jnp.sum(err, axis=0, keepdims=True)

        @pl.when(i == last)
        def _ragged_block():
            r = jax.lax.broadcasted_iota(jnp.int32, err.shape, 0)
            masked = jnp.where(r < rows_in_last, err, jnp.float32(0.0))
            acc_ref[...] += jnp.sum(masked, axis=0, keepdims=True)
    else:
        acc_ref[...] += jnp.sum(err, axis=0, keepdims=True)

    @pl.when(i == last)
    def _finalize():
        # Lane-dense partial output; cross-lane reduce happens in the wrapper.
        o_ref[...] = acc_ref[...]


def loss_mrae(outputs: jax.Array, label: jax.Array, *,
              max_block_rows: int = _MAX_BLOCK_ROWS,
              approx_reciprocal: bool = False) -> jax.Array:
    """Pallas TPU MRAE loss. outputs / label: any equal shape (e.g. NCHW)."""
    assert outputs.shape == label.shape, "outputs and label must have same shape"

    n = outputs.size
    out_flat = outputs.reshape(-1)
    lab_flat = label.reshape(-1)

    # Only pad when n is not a multiple of 128 (pad < 128 zeros).  Zero pads
    # contribute |0-0|/(0+eps) == 0, so no lane mask is needed in-kernel.
    rem = n % _LANES
    if rem:
        pad = _LANES - rem
        out_flat = jnp.pad(out_flat, (0, pad))
        lab_flat = jnp.pad(lab_flat, (0, pad))

    rows = out_flat.size // _LANES
    out2d = out_flat.reshape(rows, _LANES)
    lab2d = lab_flat.reshape(rows, _LANES)

    # Full-array block for small inputs (exempt from the /8 rule); otherwise a
    # large 8-aligned block.  A ragged last block is masked in-kernel (gated).
    block_rows = rows if rows <= max_block_rows else max_block_rows
    num_blocks = pl.cdiv(rows, block_rows)
    rows_in_last = rows % block_rows      # 0 -> last block is full

    blk = pl.BlockSpec((block_rows, _LANES), lambda i: (i, 0))

    partials = pl.pallas_call(
        functools.partial(
            _mrae_kernel,
            rows_in_last=rows_in_last,
            approx_recip=approx_reciprocal,
        ),
        out_shape=jax.ShapeDtypeStruct((1, _LANES), jnp.float32),
        grid_spec=pltpu.PrefetchScalarGridSpec(
            num_scalar_prefetch=0,
            grid=(num_blocks,),
            in_specs=[blk, blk],
            out_specs=pl.BlockSpec((1, _LANES), lambda i: (0, 0)),
            scratch_shapes=[pltpu.VMEM((1, _LANES), jnp.float32)],
        ),
        compiler_params=pltpu.CompilerParams(
            dimension_semantics=("arbitrary",),
            vmem_limit_bytes=_VMEM_LIMIT_BYTES,
        ),
    )(out2d, lab2d)

    inv_n = 1.0 / float(n)                # exact double-precision reciprocal
    return jnp.sum(partials) * inv_n


def loss_mrae_ref(outputs, label):
    error = jnp.abs(outputs - label) / (label + _EPS)
    return jnp.mean(error.reshape(-1))


if __name__ == "__main__":
    key = jax.random.PRNGKey(0)
    k1, k2, k3, k4 = jax.random.split(key, 4)

    # Primary small NCHW test (shapes consistent with the module's typical use).
    shape = (2, 4, 16, 16)
    outputs = jax.random.uniform(k1, shape, jnp.float32, minval=0.0, maxval=1.0)
    label = jax.random.uniform(k2, shape, jnp.float32, minval=0.1, maxval=1.0)
    got = jax.block_until_ready(loss_mrae(outputs, label))
    ref = loss_mrae_ref(outputs, label)
    assert jnp.allclose(got, ref, rtol=1e-5, atol=1e-6), (got, ref)

    # Odd element count -> exercises the small zero-pad path.
    shape2 = (2, 3, 17, 16)
    o2 = jax.random.uniform(k3, shape2, jnp.float32, minval=0.0, maxval=1.0)
    l2 = jax.random.uniform(k4, shape2, jnp.float32, minval=0.1, maxval=1.0)
    got2 = jax.block_until_ready(loss_mrae(o2, l2))
    ref2 = loss_mrae_ref(o2, l2)
    assert jnp.allclose(got2, ref2, rtol=1e-5, atol=1e-6), (got2, ref2)

    # Tiny block size -> exercises the multi-block grid + gated ragged tail.
    got3 = jax.block_until_ready(loss_mrae(o2, l2, max_block_rows=8))
    assert jnp.allclose(got3, ref2, rtol=1e-5, atol=1e-6), (got3, ref2)

    print("KERNEL_OK")
</pallas_src>

<mosaic_0001>
module attributes {stable_mosaic.version = 11 : i64} {
  func.func @_mrae_kernel(%arg0: i32, %arg1: memref<16x128xf32, #tpu.memory_space<vmem>>, %arg2: memref<16x128xf32, #tpu.memory_space<vmem>>, %arg3: memref<1x128xf32, #tpu.memory_space<vmem>>, %arg4: memref<1x128xf32, #tpu.memory_space<vmem>>) attributes {dimension_semantics = [#tpu.dimension_semantics<arbitrary>], iteration_bounds = array<i64: 1>, scalar_prefetch = 0 : i64, scratch_operands = 1 : i64, tpu.core_type = #tpu.core_type<tc>, window_params = [{transform_indices = @transform_0, window_bounds = array<i64: 16, 128>}, {transform_indices = @transform_1, window_bounds = array<i64: 16, 128>}, {pipeline_mode = #tpu.pipeline_mode<synchronous>, transform_indices = @transform_2, window_bounds = array<i64: 1, 128>}]} {
    %c0_i32 = arith.constant 0 : i32
    %0 = arith.cmpi eq, %arg0, %c0_i32 : i32
    %1 = arith.extui %0 : i1 to i32
    %c0_i32_0 = arith.constant 0 : i32
    %2 = arith.cmpi ne, %1, %c0_i32_0 : i32
    scf.if %2 {
      %cst_11 = arith.constant 0.000000e+00 : f32
      %18 = vector.broadcast %cst_11 : f32 to vector<1x128xf32>
      %c0_12 = arith.constant 0 : index
      %c0_13 = arith.constant 0 : index
      %19 = vector.load %arg4[%c0_12, %c0_13] : memref<1x128xf32, #tpu.memory_space<vmem>>, vector<1x128xf32>
      tpu.vector_store %arg4[%c0_12, %c0_13], %18 {strides = array<i32>} : memref<1x128xf32, #tpu.memory_space<vmem>>, vector<1x128xf32>,
    } else {
    }
    %c0 = arith.constant 0 : index
    %c0_1 = arith.constant 0 : index
    %3 = vector.load %arg1[%c0, %c0_1] : memref<16x128xf32, #tpu.memory_space<vmem>>, vector<16x128xf32>
    %c0_2 = arith.constant 0 : index
    %c0_3 = arith.constant 0 : index
    %4 = vector.load %arg2[%c0_2, %c0_3] : memref<16x128xf32, #tpu.memory_space<vmem>>, vector<16x128xf32>
    %5 = arith.subf %3, %4 : vector<16x128xf32>
    %6 = math.absf %5 : vector<16x128xf32>
    %cst = arith.constant 9.99999997E-7 : f32
    %7 = vector.broadcast %cst : f32 to vector<16x128xf32>
    %8 = arith.addf %4, %7 : vector<16x128xf32>
    %9 = arith.divf %6, %8 : vector<16x128xf32>
    %c0_4 = arith.constant 0 : index
    %c0_5 = arith.constant 0 : index
    %10 = vector.load %arg4[%c0_4, %c0_5] : memref<1x128xf32, #tpu.memory_space<vmem>>, vector<1x128xf32>
    %cst_6 = arith.constant dense<0.000000e+00> : vector<128xf32>
    %11 = vector.multi_reduction <add>, %9, %cst_6 [0] : vector<16x128xf32> to vector<128xf32>
    %12 = vector.shape_cast %11 : vector<128xf32> to vector<1x128xf32>
    %13 = arith.addf %10, %12 : vector<1x128xf32>
    %c0_7 = arith.constant 0 : index
    %c0_8 = arith.constant 0 : index
    %14 = vector.load %arg4[%c0_7, %c0_8] : memref<1x128xf32, #tpu.memory_space<vmem>>, vector<1x128xf32>
    tpu.vector_store %arg4[%c0_7, %c0_8], %13 {strides = array<i32>} : memref<1x128xf32, #tpu.memory_space<vmem>>, vector<1x128xf32>,
    %c0_i32_9 = arith.constant 0 : i32
    %15 = arith.cmpi eq, %arg0, %c0_i32_9 : i32
    %16 = arith.extui %15 : i1 to i32
    %c0_i32_10 = arith.constant 0 : i32
    %17 = arith.cmpi ne, %16, %c0_i32_10 : i32
    scf.if %17 {
      %c0_11 = arith.constant 0 : index
      %c0_12 = arith.constant 0 : index
      %18 = vector.load %arg4[%c0_11, %c0_12] : memref<1x128xf32, #tpu.memory_space<vmem>>, vector<1x128xf32>
      %c0_13 = arith.constant 0 : index
      %c0_14 = arith.constant 0 : index
      %19 = vector.load %arg3[%c0_13, %c0_14] : memref<1x128xf32, #tpu.memory_space<vmem>>, vector<1x128xf32>
      tpu.vector_store %arg3[%c0_13, %c0_14], %18 {strides = array<i32>} : memref<1x128xf32, #tpu.memory_space<vmem>>, vector<1x128xf32>,
    } else {
    }
    return
  }
  func.func @transform_0(%arg0: i32) -> (i32, i32) {
    %c0_i32 = arith.constant 0 : i32
    %c0_i32_0 = arith.constant 0 : i32
    return %arg0, %c0_i32 : i32, i32
  }
  func.func @transform_1(%arg0: i32) -> (i32, i32) {
    %c0_i32 = arith.constant 0 : i32
    %c0_i32_0 = arith.constant 0 : i32
    return %arg0, %c0_i32 : i32, i32
  }
  func.func @transform_2(%arg0: i32) -> (i32, i32) {
    %c0_i32 = arith.constant 0 : i32
    %c0_i32_0 = arith.constant 0 : i32
    %c0_i32_1 = arith.constant 0 : i32
    return %c0_i32, %c0_i32_0 : i32, i32
  }
}

</mosaic_0001>

<llo_original>
// kernel: tpu_custom_call.1
$region0: #{tpu_custom_call.1}
  #allocation0 [shape = 'u32[]', space=smem, size = 0x4, offset = 0x4, fixed_abs, tag = 'smem constant byte address 0x4 - core index']
  #allocation1 [shape = 'u32[72,128]{1,0:T(1,128)}', space=vmem, size = 0x9000, scoped, tag = 'internal scratch']
  #allocation2 [shape = 'f32[1,128]{1,0:T(1,128)}', space=vmem, size = 0x200, scoped, tag = 'scratch operand']
  %s0 = inlined_call_operand.hbm [shape: f32[16,128], index: 0, kind: input, shape index: {}]
  %s1 = inlined_call_operand.hbm [shape: f32[16,128], index: 1, kind: input, shape index: {}]
  %s2 = inlined_call_operand.hbm [shape: f32[1,128], index: 2, kind: output, shape index: {}]
  %s3 = sld [smem:[#allocation0]]
  $region34: #{tpu_custom_call.1} parent=0
    _
  %s5 = ssub.s32 1, %s3
  %s6 = scalar_select 0, %s5, %s3
  $region1: #{tpu_custom_call.1} parent=0
    #allocation3 [shape = 'u8[8192]{0}', space=vmem, size = 0x2000, scoped, tag = 'input window, operand 0, single buffered']
    #allocation4 [shape = 's32[1]{0}', space=sflag, size = 0x4, scoped, tag = 'scoped memory for tpu_custom_call.1']
    #allocation5 [shape = 's32[1]{0}', space=sflag, size = 0x4, scoped, tag = 'scoped memory for tpu_custom_call.1']
    #allocation6 [shape = 'u8[8192]{0}', space=vmem, size = 0x2000, scoped, tag = 'input window, operand 1, single buffered']
    #allocation7 [shape = 's32[1]{0}', space=sflag, size = 0x4, scoped, tag = 'scoped memory for tpu_custom_call.1']
    #allocation8 [shape = 'u8[512]{0}', space=vmem, size = 0x400, scoped, tag = 'output window, operand 0, single buffered']
    %7 = vsyncpa [#allocation4], 0
    %8 = vsyncpa [#allocation7], 0
    %9 = vsyncpa [#allocation5], 0
    // Predicated region
    $region2: #{tpu_custom_call.1} parent=1 // pred_check
      _
    $region3: #{tpu_custom_call.1} parent=1 // pred_check_branch
      %11 = sbr.rel (0) target = $region5
    $region4: #{tpu_custom_call.1} parent=1 // pred_region
      %13 = vsyncadd [#allocation4], 0
      %s14 = sshll.u32 %s0, 4
      %s15 = int_to_ptr.hbm [resolvable:$true] %s14
      %s16 = sshll.u32 [#allocation3], 4
      %s17 = int_to_ptr.vmem [resolvable:$true] %s16
      %22 = dma.hbm_to_vmem [thread:$0]  %s15, 256, %s17, [#allocation4], 128, 128, 8
    $region5: #{tpu_custom_call.1} parent=1 // pred_fallthru
      _
    // Predicated region
    $region6: #{tpu_custom_call.1} parent=1 // pred_check
      _
    $region7: #{tpu_custom_call.1} parent=1 // pred_check_branch
      %24 = sbr.rel (0) target = $region9
    $region8: #{tpu_custom_call.1} parent=1 // pred_region
      %26 = vsyncadd [#allocation7], 0
      %s27 = sshll.u32 %s1, 4
      %s28 = int_to_ptr.hbm [resolvable:$true] %s27
      %s29 = sshll.u32 [#allocation6], 4
      %s30 = int_to_ptr.vmem [resolvable:$true] %s29
      %35 = dma.hbm_to_vmem [thread:$0]  %s28, 256, %s30, [#allocation7], 128, 128, 8
    $region9: #{tpu_custom_call.1} parent=1 // pred_fallthru
      _
    // Predicated region
    $region10: #{tpu_custom_call.1} parent=1 // pred_check
      _
    $region11: #{tpu_custom_call.1} parent=1 // pred_check_branch
      %37 = sbr.rel (0) target = $region13
    $region12: #{tpu_custom_call.1} parent=1 // pred_region
      %39 = dma.done [#allocation4], 256
    $region13: #{tpu_custom_call.1} parent=1 // pred_fallthru
      _
    // Predicated region
    $region14: #{tpu_custom_call.1} parent=1 // pred_check
      _
    $region15: #{tpu_custom_call.1} parent=1 // pred_check_branch
      %41 = sbr.rel (0) target = $region17
    $region16: #{tpu_custom_call.1} parent=1 // pred_region
      %43 = dma.done [#allocation7], 256
    $region17: #{tpu_custom_call.1} parent=1 // pred_fallthru
      _
    %p44 = scmp.eq.s32.totalorder 0, 0
    // Predicated region
    $region18: #{tpu_custom_call.1} parent=1 // pred_check
      %p45 = pneg %p44
    $region19: #{tpu_custom_call.1} parent=1 // pred_check_branch
      %47 = sbr.rel (%p45) target = $region21
    $region20: #{tpu_custom_call.1} parent=1 // pred_region
      %48 = vst [vmem:[#allocation2] sm:$0x1] 0.0
    $region21: #{tpu_custom_call.1} parent=1 // pred_fallthru
      _
    %v49 = vld [vmem:[#allocation3] sm:$0xff]
    %v50 = vld [vmem:[#allocation3 + $0x8] sm:$0xff]
    %v51 = vld [vmem:[#allocation6] sm:$0xff]
    %v52 = vld [vmem:[#allocation6 + $0x8] sm:$0xff]
    %v53 = vsub.f32 %v49, %v51
    %v54 = vsub.f32 %v50, %v52
    %v55 = vand.u32 2147483647, %v53
    %v56 = vand.u32 2147483647, %v54
    %v57 = vadd.f32 %v51, 1e-06
    %v58 = vadd.f32 %v52, 1e-06
    %v59 = vrcp.pop %v57
    %v60 = vmul.f32 %v57, %v59
    %v61 = vsub.f32 1.0, %v60
    %v62 = vmul.f32 %v59, %v61
    %v63 = vadd.f32 %v59, %v62
    %vm64 = vweird.f32 %v57
    %vm65 = vweird.f32 %v59
    %vm66 = vmor %vm64, %vm65
    %v67 = vsel %vm66, %v59, %v63
    %v68 = vand.u32 2147483647, %v57
    %vm69 = vcmp.eq.f32.partialorder %v68, 8.507059e+37
    %v70 = vand.u32 %v57, 2147483648
    %v71 = vor.u32 1.1754944e-38, %v70
    %v72 = vsel %vm69, %v71, %v67
    %v73 = vmul.f32 %v55, %v72
    %v74 = vrcp.pop %v58
    %v75 = vmul.f32 %v58, %v74
    %v76 = vsub.f32 1.0, %v75
    %v77 = vmul.f32 %v74, %v76
    %v78 = vadd.f32 %v74, %v77
    %vm79 = vweird.f32 %v58
    %vm80 = vweird.f32 %v74
    %vm81 = vmor %vm79, %vm80
    %v82 = vsel %vm81, %v74, %v78
    %v83 = vand.u32 2147483647, %v58
    %vm84 = vcmp.eq.f32.partialorder %v83, 8.507059e+37
    %v85 = vand.u32 %v58, 2147483648
    %v86 = vor.u32 1.1754944e-38, %v85
    %v87 = vsel %vm84, %v86, %v82
    %v88 = vmul.f32 %v56, %v87
    %v89 = vld [vmem:[#allocation2] sm:$0x1]
    %v90 = vadd.f32 %v73, %v88
    %v91 = vrot.slane %v90, 4
    %v92 = vadd.f32 %v90, %v91
    %v93 = vrot.slane %v92, 2
    %v94 = vadd.f32 %v92, %v93
    %v95 = vrot.slane %v94, 1
    %v96 = vadd.f32 %v94, %v95
    %v97 = vadd.f32 %v89, %v96
    %98 = vst [vmem:[#allocation2] sm:$0x1] %v97
    // Predicated region
    $region22: #{tpu_custom_call.1} parent=1 // pred_check
      %p99 = pneg %p44
    $region23: #{tpu_custom_call.1} parent=1 // pred_check_branch
      %101 = sbr.rel (%p99) target = $region25
    $region24: #{tpu_custom_call.1} parent=1 // pred_region
      %v102 = vld [vmem:[#allocation2] sm:$0x1]
      %103 = vst [vmem:[#allocation8] sm:$0x1] %v102
    $region25: #{tpu_custom_call.1} parent=1 // pred_fallthru
      _
    // Predicated region
    $region26: #{tpu_custom_call.1} parent=1 // pred_check
      _
    $region27: #{tpu_custom_call.1} parent=1 // pred_check_branch
      %105 = sbr.rel (0) target = $region29
    $region28: #{tpu_custom_call.1} parent=1 // pred_region
      %107 = vsyncadd [#allocation5], 0
      %s109 = sshll.u32 [#allocation8], 4
      %s110 = int_to_ptr.vmem [resolvable:$true] %s109
      %s111 = sshll.u32 %s2, 4
      %s112 = int_to_ptr.hbm [resolvable:$true] %s111
      %114 = dma.vmem_to_hbm [thread:$0]  %s110, 16, %s112, [#allocation5]
    $region29: #{tpu_custom_call.1} parent=1 // pred_fallthru
      _
    // Predicated region
    $region30: #{tpu_custom_call.1} parent=1 // pred_check
      _
    $region31: #{tpu_custom_call.1} parent=1 // pred_check_branch
      %116 = sbr.rel (0) target = $region33
    $region32: #{tpu_custom_call.1} parent=1 // pred_region
      %118 = dma.done [#allocation5], 16
    $region33: #{tpu_custom_call.1} parent=1 // pred_fallthru
      _
    %119 = vsyncpa [#allocation4], 1
    %120 = vsyncpa [#allocation7], 1
    %121 = vsyncpa [#allocation5], 1

</llo_original>
